<compile_context>
chip_gen: v5e
topology: v5e:2x2
jax: 0.10.0
libtpu: 0.0.40
codegen_flags: <defaults>
</compile_context>

<pallas_src>
import functools

import jax
import jax.numpy as jnp
from jax.experimental import pallas as pl
from jax.experimental.pallas import tpu as pltpu


# ----------------------------------------------------------------------------
# forward(): return the embedding table — single HBM->HBM DMA
# ----------------------------------------------------------------------------
def _forward_copy_kernel(emb_hbm_ref, out_hbm_ref, sem):
    cp = pltpu.make_async_copy(emb_hbm_ref, out_hbm_ref, sem)
    cp.start()
    cp.wait()


def poincare_forward(embeddings):
    """Identity 'forward' of the module: returns (a copy of) the table.

    Implemented as one HBM->HBM async copy: no VMEM staging, no vld/vst pass,
    no masked narrow stores from a last-dim-8 block.
    """
    n, d = embeddings.shape
    return pl.pallas_call(
        _forward_copy_kernel,
        out_shape=jax.ShapeDtypeStruct((n, d), embeddings.dtype),
        in_specs=[pl.BlockSpec(memory_space=pl.ANY)],
        out_specs=pl.BlockSpec(memory_space=pl.ANY),
        scratch_shapes=[pltpu.SemaphoreType.DMA(())],
    )(embeddings)


# ----------------------------------------------------------------------------
# loss(): weighted mean of Poincaré distances over a batch of pairs
#   dist(u, v) = acosh(1 + 2*||u-v||^2 / ((1-||u||^2)(1-||v||^2)))
#   loss = sum_k scores[k] * dist(u_k, v_k) / B
# ----------------------------------------------------------------------------
_EPS = 1e-5


def _loss_kernel(packed_ref, out_ref, acc_ref, *, d):
    # packed_ref: (pad8(2*d+1), TB) f32 — rows [0:d]=u, [d:2d]=v, [2d]=scores,
    # batch on the lane axis. acc_ref: (1, TB) f32 VMEM accumulator.
    t_idx = pl.program_id(0)

    @pl.when(t_idx == 0)
    def _():
        acc_ref[...] = jnp.zeros_like(acc_ref)

    u = packed_ref[0:d, :]                   # (D, TB)
    v = packed_ref[d:2 * d, :]               # (D, TB)
    s = packed_ref[2 * d:2 * d + 1, :]       # (1, TB)

    # Squared norms, reduced over the (sublane) feature axis.
    nu = jnp.sum(u * u, axis=0, keepdims=True)           # (1, TB)
    nv = jnp.sum(v * v, axis=0, keepdims=True)           # (1, TB)
    diff = u - v
    dd = jnp.sum(diff * diff, axis=0, keepdims=True)     # (1, TB)

    # Clamp norms away from the unit-sphere boundary (ball safety; the
    # unclamped reference diverges only for embeddings near the boundary).
    nu = jnp.minimum(nu, 1.0 - _EPS)
    nv = jnp.minimum(nv, 1.0 - _EPS)

    denom = (1.0 - nu) * (1.0 - nv)
    t = 2.0 * dd * pl.reciprocal(denom, approx=False)    # t = x - 1 >= 0
    # Numerically stable acosh(1 + t) = log1p(t + sqrt(t * (t + 2))).
    dist = jnp.log1p(t + jnp.sqrt(t * (t + 2.0)))         # (1, TB)

    # Lane-wise accumulation; the single cross-lane reduce happens once.
    acc_ref[...] += s * dist

    @pl.when(t_idx == pl.num_programs(0) - 1)
    def _():
        out_ref[0, 0] = jnp.sum(acc_ref[...])


def poincare_loss(embeddings, i_idx, j_idx, scores, *, lane_tile=2048):
    """Weighted-mean Poincaré-distance loss for a batch of (i, j, score)."""
    # Gather pairs (XLA glue). See TODO(synk) at top for in-kernel gather.
    u = jnp.take(embeddings, i_idx, axis=0).astype(jnp.float32)   # (B, D)
    v = jnp.take(embeddings, j_idx, axis=0).astype(jnp.float32)   # (B, D)
    b, d = u.shape

    # Lane-dense layout: batch on the 128-lane axis; don't over-pad small
    # batches. Zero-padded pairs contribute 0 (dd=0, denom=1, s=0).
    lane_tile = max(128, ((lane_tile + 127) // 128) * 128)
    lane_tile = min(lane_tile, max(128, ((b + 127) // 128) * 128))
    tiles = pl.cdiv(b, lane_tile)
    padded_b = tiles * lane_tile

    rows = 2 * d + 1
    padded_rows = ((rows + 7) // 8) * 8

    # One packed slab -> one DMA per grid step.
    packed = jnp.zeros((padded_rows, padded_b), jnp.float32)
    packed = packed.at[0:d, :b].set(u.T)
    packed = packed.at[d:2 * d, :b].set(v.T)
    packed = packed.at[2 * d, :b].set(scores.astype(jnp.float32))

    total = pl.pallas_call(
        functools.partial(_loss_kernel, d=d),
        out_shape=jax.ShapeDtypeStruct((1, 1), jnp.float32),
        grid=(tiles,),
        in_specs=[pl.BlockSpec((padded_rows, lane_tile), lambda t: (0, t))],
        out_specs=pl.BlockSpec((1, 1), lambda t: (0, 0),
                               memory_space=pltpu.SMEM),
        scratch_shapes=[pltpu.VMEM((1, lane_tile), jnp.float32)],
        compiler_params=pltpu.CompilerParams(
            # batch-tile axis carries the accumulator -> "arbitrary".
            dimension_semantics=("arbitrary",)),
    )(packed)

    return total[0, 0] / jnp.float32(b)


# ----------------------------------------------------------------------------
# Parameter init (mirrors torch.randn(N, D) * 0.1)
# ----------------------------------------------------------------------------
def init_poincare_embedding(key, num_embeddings, embedding_dim):
    return jax.random.normal(key, (num_embeddings, embedding_dim),
                             dtype=jnp.float32) * 0.1


if __name__ == "__main__":
    key = jax.random.PRNGKey(0)
    k_emb, k_i, k_j, k_s = jax.random.split(key, 4)

    num_embeddings, embedding_dim = 16, 8
    batch = 8

    embeddings = init_poincare_embedding(k_emb, num_embeddings, embedding_dim)

    # forward(): return the embedding table
    emb_out = poincare_forward(embeddings)
    jax.block_until_ready(emb_out)
    assert emb_out.shape == (num_embeddings, embedding_dim)
    assert jnp.allclose(emb_out, embeddings)

    # loss() on a deterministic batch of pairs
    i_idx = jax.random.randint(k_i, (batch,), 0, num_embeddings)
    j_idx = jax.random.randint(k_j, (batch,), 0, num_embeddings)
    scores = jax.random.uniform(k_s, (batch,), dtype=jnp.float32)

    loss_val = poincare_loss(embeddings, i_idx, j_idx, scores)
    jax.block_until_ready(loss_val)

    # reference check in plain JAX
    u = jnp.take(embeddings, i_idx, axis=0)
    v = jnp.take(embeddings, j_idx, axis=0)
    nu = jnp.sum(u * u, axis=-1)
    nv = jnp.sum(v * v, axis=-1)
    dd = jnp.sum((u - v) ** 2, axis=-1)
    ref = jnp.mean(scores * jnp.arccosh(
        1.0 + 2.0 * dd / ((1.0 - nu) * (1.0 - nv))))
    assert jnp.allclose(loss_val, ref, atol=1e-5, rtol=1e-5), (loss_val, ref)

    print("KERNEL_OK")
</pallas_src>

<mosaic_0001>
module attributes {stable_mosaic.version = 11 : i64} {
  func.func @_forward_copy_kernel(%arg0: memref<16x8xf32, #tpu.memory_space<any>>, %arg1: memref<16x8xf32, #tpu.memory_space<any>>, %arg2: memref<!tpu.dma_semaphore, #tpu.memory_space<semaphore_mem>>) attributes {dimension_semantics = [], scalar_prefetch = 0 : i64, scratch_operands = 1 : i64, tpu.core_type = #tpu.core_type<tc>} {
    tpu.enqueue_dma source(%arg0 : memref<16x8xf32, #tpu.memory_space<any>>) target(%arg1 : memref<16x8xf32, #tpu.memory_space<any>>) target_semaphore(%arg2 : memref<!tpu.dma_semaphore, #tpu.memory_space<semaphore_mem>>)
    tpu.wait_dma2 semaphore(%arg2 : memref<!tpu.dma_semaphore, #tpu.memory_space<semaphore_mem>>) src(%arg0 : memref<16x8xf32, #tpu.memory_space<any>>) dst(%arg1 : memref<16x8xf32, #tpu.memory_space<any>>)
    return
  }
}

</mosaic_0001>

<llo_original>
// kernel: tpu_custom_call.1
$region0: #{tpu_custom_call.1}
  #allocation0 [shape = 'u32[]', space=smem, size = 0x4, offset = 0x4, fixed_abs, tag = 'smem constant byte address 0x4 - core index']
  #allocation1 [shape = 'u32[72,128]{1,0:T(1,128)}', space=vmem, size = 0x9000, scoped, tag = 'internal scratch']
  #allocation2 [shape = 's32[1]{0}', space=sflag, size = 0x4, scoped, tag = 'scratch operand']
  #allocation3 [shape = 's32[]', space=sflag, size = 0x4, offset = 0, fixed_abs, tag = 'sflag constant byte address 0x0 - dummy sync flag']
  %s0 = inlined_call_operand.vmem [shape: f32[16,8], index: 0, kind: input, shape index: {}]
  %s1 = inlined_call_operand.vmem [shape: f32[16,8], index: 1, kind: output, shape index: {}]
  %s2 = sld [smem:[#allocation0]]
  $region21: #{tpu_custom_call.1} parent=0
    _
  %s4 = ssub.s32 1, %s2
  %s5 = scalar_select 0, %s4, %s2
  // Predicated region
  $region2: #{tpu_custom_call.1} parent=0 // pred_check
    _
  $region3: #{tpu_custom_call.1} parent=0 // pred_check_branch
    %7 = sbr.rel (0) target = $region5
  $region4: #{tpu_custom_call.1} parent=0 // pred_region
    loop: start=0, step=1, limit=1
    $region6: #{tpu_custom_call.1} parent=4 // loop_pre_header
      _
    $region7: #{tpu_custom_call.1} parent=4 // loop_header
      %s9 = sphi 0, %s13
      %p10 = scmp.ge.s32.totalorder %s9, 1
      %s14 = sphi %s0, %s0
      %s15 = sphi %s1, %s1
    $region8: #{tpu_custom_call.1} parent=4 // loop_header_branch
      %12 = sbr.rel (%p10) target = $region12
    $region9: #{tpu_custom_call.1} parent=4 // loop_body
      %v16 = vld [vmem:[%s14] sm:$0xff]
      %17 = vst [vmem:[%s15] sm:$0xff] %v16
      %v18 = vld [vmem:[%s14 + $0x8] sm:$0xff]
      %19 = vst [vmem:[%s15 + $0x8] sm:$0xff] %v18
    $region10: #{tpu_custom_call.1} parent=4 // loop_footer
      %s13 = sadd.s32 1, %s9
    $region11: #{tpu_custom_call.1} parent=4 // loop_footer_branch
      %8 = sbr.rel target = $region7
    $region12: #{tpu_custom_call.1} parent=4 // loop_exit
      _
  $region5: #{tpu_custom_call.1} parent=0 // pred_fallthru
    _
  // Predicated region
  $region13: #{tpu_custom_call.1} parent=0 // pred_check
    _
  $region14: #{tpu_custom_call.1} parent=0 // pred_check_branch
    %21 = sbr.rel target = $region16
  $region15: #{tpu_custom_call.1} parent=0 // pred_region
    _
  $region16: #{tpu_custom_call.1} parent=0 // pred_fallthru
    _
  // Predicated region
  $region17: #{tpu_custom_call.1} parent=0 // pred_check
    _
  $region18: #{tpu_custom_call.1} parent=0 // pred_check_branch
    %24 = sbr.rel (0) target = $region20
  $region19: #{tpu_custom_call.1} parent=0 // pred_region
    %25 = vsyncadd [#allocation2], 256
  $region20: #{tpu_custom_call.1} parent=0 // pred_fallthru
    _
  %s26 = smul.u32 16, 1
  %s27 = sshll.u32 %s26, 4
  %28 = dma.done [#allocation2], %s27
  %29 = vsyncmov [#allocation2]
  %s30 = vpop.sfrf %29
  %p31 = scmp.eq.s32.totalorder %s30, 0
  %p32 = pneg %p31
  %34 = shalt.err (%p32)

</llo_original>
